<compile_context>
chip_gen: v6e
topology: v6e:2x2x1
jax: 0.10.0
libtpu: 0.0.40
codegen_flags: <defaults>
</compile_context>

<pallas_src>
import jax
import jax.numpy as jnp
from jax.experimental import pallas as pl
from jax.experimental.pallas import tpu as pltpu


# ------------------------------ kernels -------------------------------------


def _relu_pair_kernel(a_ref, b_ref, oa_ref, ob_ref):
    # ReLU on the VPU; Dropout(p=0.3) in eval mode is identity -> no masking.
    # Scalar immediate 0.0 avoids broadcasting a zero tile per grid step.
    oa_ref[...] = jnp.maximum(a_ref[...], 0.0)
    ob_ref[...] = jnp.maximum(b_ref[...], 0.0)


def _relu_single_kernel(x_ref, o_ref):
    o_ref[...] = jnp.maximum(x_ref[...], 0.0)


# --------------------------- block-size picker ------------------------------

# Target ~2 MiB per array per tile: with (2 in + 2 out) x 2 pipeline buffers
# that is ~16 MiB of VMEM, safely inside the raised scoped limit on every
# chip generation (v5e/v6e 128 MiB physical, v7x 64 MiB physical).
_TARGET_TILE_BYTES = 2 * 1024 * 1024
_MAX_FEAT_BLOCK = 2048
_VMEM_LIMIT_BYTES = 48 * 1024 * 1024


def _pick_blocks(rows, feats, dtype_bytes, target_bytes=_TARGET_TILE_BYTES):
    """Pick (block_rows, block_feats): multiples of (8, 128) that divide the
    array exactly (no partial blocks) and keep each tile <= target_bytes."""
    # Feature block: full width when modest; otherwise largest multiple of 128
    # <= _MAX_FEAT_BLOCK that divides feats (fall back to full width).
    if feats <= _MAX_FEAT_BLOCK:
        bf = feats
    else:
        bf = _MAX_FEAT_BLOCK - (_MAX_FEAT_BLOCK % 128)
        while bf > 128 and feats % bf != 0:
            bf -= 128
        if feats % bf != 0:
            bf = feats
    # Row block: as many rows as fit in the byte budget, multiple of 8,
    # dividing rows exactly.
    max_rows = max(8, target_bytes // max(1, bf * dtype_bytes))
    br = min(rows, max_rows)
    if br != rows:
        br = (br // 8) * 8
        while br > 8 and rows % br != 0:
            br -= 8
        if br < 8 or rows % br != 0:
            br = rows
    return br, bf


def _grid_and_specs(rows, feats, dtype_bytes):
    br, bf = _pick_blocks(rows, feats, dtype_bytes)
    grid = (rows // br, feats // bf)
    spec = pl.BlockSpec((br, bf), lambda i, j: (i, j))
    return grid, spec


# ------------------------------ wrappers ------------------------------------


def relu_dropout_eval_pair(a: jax.Array, b: jax.Array):
    """Fused ReLU (+ eval-mode Dropout == identity) on two same-shape arrays
    in one pallas_call."""
    assert a.shape == b.shape and a.dtype == b.dtype
    rows, feats = a.shape
    assert rows % 8 == 0, "rows must be a multiple of 8 (sublane width)"
    assert feats % 128 == 0, "feature dim must be a multiple of 128 (lane width)"

    grid, spec = _grid_and_specs(rows, feats, a.dtype.itemsize)

    return pl.pallas_call(
        _relu_pair_kernel,
        out_shape=(
            jax.ShapeDtypeStruct((rows, feats), a.dtype),
            jax.ShapeDtypeStruct((rows, feats), b.dtype),
        ),
        grid_spec=pltpu.PrefetchScalarGridSpec(
            num_scalar_prefetch=0,
            grid=grid,
            in_specs=[spec, spec],
            out_specs=[spec, spec],
        ),
        compiler_params=pltpu.CompilerParams(
            dimension_semantics=("parallel", "parallel"),
            vmem_limit_bytes=_VMEM_LIMIT_BYTES,
        ),
    )(a, b)


def relu_dropout_eval(x: jax.Array) -> jax.Array:
    """Single-array ReLU (+ eval-mode Dropout == identity) Pallas kernel."""
    rows, feats = x.shape
    assert rows % 8 == 0, "rows must be a multiple of 8 (sublane width)"
    assert feats % 128 == 0, "feature dim must be a multiple of 128 (lane width)"

    grid, spec = _grid_and_specs(rows, feats, x.dtype.itemsize)

    return pl.pallas_call(
        _relu_single_kernel,
        out_shape=jax.ShapeDtypeStruct((rows, feats), x.dtype),
        grid_spec=pltpu.PrefetchScalarGridSpec(
            num_scalar_prefetch=0,
            grid=grid,
            in_specs=[spec],
            out_specs=spec,
        ),
        compiler_params=pltpu.CompilerParams(
            dimension_semantics=("parallel", "parallel"),
            vmem_limit_bytes=_VMEM_LIMIT_BYTES,
        ),
    )(x)


class NeuralNetPallas:
    """JAX/Pallas mirror of the PyTorch NeuralNet module.

    The PyTorch forward() is `pass` (returns None). We expose both that exact
    semantic (`forward` returns None) and the kernelized activation path
    (`apply_activation`) built from the module's declared submodules.
    """

    def __init__(self):
        # ReLU and Dropout are parameter-free; nothing to initialize.
        self.dropout_p = 0.3  # unused in eval mode (identity)

    def forward(self, enzyme, molecule):
        # Faithful reproduction of the reference forward: it does nothing.
        return None

    def apply_activation(self, enzyme, molecule):
        # Fuse both inputs into one pallas_call when their shapes/dtypes
        # match (single launch); otherwise fall back to two calls.
        if enzyme.shape == molecule.shape and enzyme.dtype == molecule.dtype:
            return relu_dropout_eval_pair(enzyme, molecule)
        return relu_dropout_eval(enzyme), relu_dropout_eval(molecule)


if __name__ == "__main__":
    key = jax.random.PRNGKey(0)
    k_e, k_m = jax.random.split(key)

    # Small shapes consistent with a (graph-embedding, graph-embedding) pair:
    # seq=8 rows, hidden=128 features each.
    enzyme = jax.random.normal(k_e, (8, 128), dtype=jnp.float32)
    molecule = jax.random.normal(k_m, (8, 128), dtype=jnp.float32)

    net = NeuralNetPallas()

    # Exact forward semantics (no-op).
    assert net.forward(enzyme, molecule) is None

    # Kernelized activation path (single fused pallas_call).
    out_e, out_m = net.apply_activation(enzyme, molecule)
    out_e = jax.block_until_ready(out_e)
    out_m = jax.block_until_ready(out_m)

    # Correctness check against plain-JAX reference.
    ref_e = jnp.maximum(enzyme, 0.0)
    ref_m = jnp.maximum(molecule, 0.0)
    assert jnp.allclose(out_e, ref_e), "enzyme ReLU mismatch"
    assert jnp.allclose(out_m, ref_m), "molecule ReLU mismatch"

    print("KERNEL_OK")
</pallas_src>

<mosaic_0001>
module attributes {stable_mosaic.version = 11 : i64} {
  func.func @_relu_pair_kernel(%arg0: i32, %arg1: i32, %arg2: memref<8x128xf32, #tpu.memory_space<vmem>>, %arg3: memref<8x128xf32, #tpu.memory_space<vmem>>, %arg4: memref<8x128xf32, #tpu.memory_space<vmem>>, %arg5: memref<8x128xf32, #tpu.memory_space<vmem>>) attributes {dimension_semantics = [#tpu.dimension_semantics<parallel>, #tpu.dimension_semantics<parallel>], iteration_bounds = array<i64: 1, 1>, scalar_prefetch = 0 : i64, scratch_operands = 0 : i64, tpu.core_type = #tpu.core_type<tc>, window_params = [{transform_indices = @transform_0, window_bounds = array<i64: 8, 128>}, {transform_indices = @transform_1, window_bounds = array<i64: 8, 128>}, {transform_indices = @transform_2, window_bounds = array<i64: 8, 128>}, {transform_indices = @transform_3, window_bounds = array<i64: 8, 128>}]} {
    %c0 = arith.constant 0 : index
    %c0_0 = arith.constant 0 : index
    %0 = vector.load %arg2[%c0, %c0_0] : memref<8x128xf32, #tpu.memory_space<vmem>>, vector<8x128xf32>
    %cst = arith.constant 0.000000e+00 : f32
    %1 = vector.broadcast %cst : f32 to vector<8x128xf32>
    %2 = arith.maximumf %0, %1 : vector<8x128xf32>
    %c0_1 = arith.constant 0 : index
    %c0_2 = arith.constant 0 : index
    %3 = vector.load %arg4[%c0_1, %c0_2] : memref<8x128xf32, #tpu.memory_space<vmem>>, vector<8x128xf32>
    tpu.vector_store %arg4[%c0_1, %c0_2], %2 {strides = array<i32>} : memref<8x128xf32, #tpu.memory_space<vmem>>, vector<8x128xf32>,
    %c0_3 = arith.constant 0 : index
    %c0_4 = arith.constant 0 : index
    %4 = vector.load %arg3[%c0_3, %c0_4] : memref<8x128xf32, #tpu.memory_space<vmem>>, vector<8x128xf32>
    %cst_5 = arith.constant 0.000000e+00 : f32
    %5 = vector.broadcast %cst_5 : f32 to vector<8x128xf32>
    %6 = arith.maximumf %4, %5 : vector<8x128xf32>
    %c0_6 = arith.constant 0 : index
    %c0_7 = arith.constant 0 : index
    %7 = vector.load %arg5[%c0_6, %c0_7] : memref<8x128xf32, #tpu.memory_space<vmem>>, vector<8x128xf32>
    tpu.vector_store %arg5[%c0_6, %c0_7], %6 {strides = array<i32>} : memref<8x128xf32, #tpu.memory_space<vmem>>, vector<8x128xf32>,
    return
  }
  func.func @transform_0(%arg0: i32, %arg1: i32) -> (i32, i32) {
    %c0_i32 = arith.constant 0 : i32
    return %arg0, %arg1 : i32, i32
  }
  func.func @transform_1(%arg0: i32, %arg1: i32) -> (i32, i32) {
    %c0_i32 = arith.constant 0 : i32
    return %arg0, %arg1 : i32, i32
  }
  func.func @transform_2(%arg0: i32, %arg1: i32) -> (i32, i32) {
    %c0_i32 = arith.constant 0 : i32
    return %arg0, %arg1 : i32, i32
  }
  func.func @transform_3(%arg0: i32, %arg1: i32) -> (i32, i32) {
    %c0_i32 = arith.constant 0 : i32
    return %arg0, %arg1 : i32, i32
  }
}

</mosaic_0001>

<llo_original>
// kernel: tpu_custom_call.1
$region0: #{tpu_custom_call.1}
  #allocation0 [shape = 'u32[]', space=smem, size = 0x4, offset = 0x4, fixed_abs, tag = 'smem constant byte address 0x4 - core index']
  #allocation1 [shape = 'u32[144,128]{1,0:T(1,128)}', space=vmem, size = 0x12000, scoped, tag = 'internal scratch']
  %s0 = inlined_call_operand.hbm [shape: f32[8,128], index: 0, kind: input, shape index: {}]
  %s1 = inlined_call_operand.hbm [shape: f32[8,128], index: 1, kind: input, shape index: {}]
  %s2 = inlined_call_operand.hbm [shape: f32[8,128], index: 2, kind: output, shape index: {0}]
  %s3 = inlined_call_operand.hbm [shape: f32[8,128], index: 3, kind: output, shape index: {1}]
  %4 = xla_tuple %s2, %s3
  %s5 = sld [smem:[#allocation0]]
  $region34: #{tpu_custom_call.1} parent=0
    _
  %s7 = ssub.s32 1, %s5
  %s8 = scalar_select 0, %s7, %s5
  $region1: #{tpu_custom_call.1} parent=0
    #allocation2 [shape = 'u8[4096]{0}', space=vmem, size = 0x1000, scoped, tag = 'input window, operand 0, single buffered']
    #allocation3 [shape = 's32[1]{0}', space=sflag, size = 0x4, scoped, tag = 'scoped memory for tpu_custom_call.1']
    #allocation4 [shape = 's32[1]{0}', space=sflag, size = 0x4, scoped, tag = 'scoped memory for tpu_custom_call.1']
    #allocation5 [shape = 'u8[4096]{0}', space=vmem, size = 0x1000, scoped, tag = 'input window, operand 1, single buffered']
    #allocation6 [shape = 's32[1]{0}', space=sflag, size = 0x4, scoped, tag = 'scoped memory for tpu_custom_call.1']
    #allocation7 [shape = 'u8[4096]{0}', space=vmem, size = 0x1000, scoped, tag = 'output window, operand 0, single buffered']
    #allocation8 [shape = 'u8[4096]{0}', space=vmem, size = 0x1000, scoped, tag = 'output window, operand 1, single buffered']
    #allocation9 [shape = 's32[1]{0}', space=sflag, size = 0x4, scoped, tag = 'scoped memory for tpu_custom_call.1']
    %9 = vsyncpa [#allocation3], 0
    %10 = vsyncpa [#allocation6], 0
    %11 = vsyncpa [#allocation4], 0
    %12 = vsyncpa [#allocation9], 0
    // Predicated region
    $region2: #{tpu_custom_call.1} parent=1 // pred_check
      _
    $region3: #{tpu_custom_call.1} parent=1 // pred_check_branch
      %14 = sbr.rel (0) target = $region5
    $region4: #{tpu_custom_call.1} parent=1 // pred_region
      %s16 = ssub.s32 128, 128
      %17 = vsyncadd [#allocation3], %s16
      %s19 = sshll.u32 [#allocation2], 4
      %s20 = int_to_ptr.vmem [resolvable:$true] %s19
      %22 = dma.hbm_to_vmem [thread:$0]  %s0, 128, %s20, [#allocation3]
    $region5: #{tpu_custom_call.1} parent=1 // pred_fallthru
      _
    // Predicated region
    $region6: #{tpu_custom_call.1} parent=1 // pred_check
      _
    $region7: #{tpu_custom_call.1} parent=1 // pred_check_branch
      %24 = sbr.rel (0) target = $region9
    $region8: #{tpu_custom_call.1} parent=1 // pred_region
      %s26 = ssub.s32 128, 128
      %27 = vsyncadd [#allocation6], %s26
      %s29 = sshll.u32 [#allocation5], 4
      %s30 = int_to_ptr.vmem [resolvable:$true] %s29
      %32 = dma.hbm_to_vmem [thread:$0]  %s1, 128, %s30, [#allocation6]
    $region9: #{tpu_custom_call.1} parent=1 // pred_fallthru
      _
    // Predicated region
    $region10: #{tpu_custom_call.1} parent=1 // pred_check
      _
    $region11: #{tpu_custom_call.1} parent=1 // pred_check_branch
      %34 = sbr.rel (0) target = $region13
    $region12: #{tpu_custom_call.1} parent=1 // pred_region
      %35 = dma.done [#allocation3], 128
    $region13: #{tpu_custom_call.1} parent=1 // pred_fallthru
      _
    // Predicated region
    $region14: #{tpu_custom_call.1} parent=1 // pred_check
      _
    $region15: #{tpu_custom_call.1} parent=1 // pred_check_branch
      %37 = sbr.rel (0) target = $region17
    $region16: #{tpu_custom_call.1} parent=1 // pred_region
      %38 = dma.done [#allocation6], 128
    $region17: #{tpu_custom_call.1} parent=1 // pred_fallthru
      _
    %v39 = vld [vmem:[#allocation2] sm:$0xff]
    %v40 = vmax.f32 %v39, 0.0
    %41 = vst [vmem:[#allocation7] sm:$0xff] %v40
    %v42 = vld [vmem:[#allocation5] sm:$0xff]
    %v43 = vmax.f32 %v42, 0.0
    %44 = vst [vmem:[#allocation8] sm:$0xff] %v43
    // Predicated region
    $region18: #{tpu_custom_call.1} parent=1 // pred_check
      _
    $region19: #{tpu_custom_call.1} parent=1 // pred_check_branch
      %46 = sbr.rel (0) target = $region21
    $region20: #{tpu_custom_call.1} parent=1 // pred_region
      %s48 = ssub.s32 128, 128
      %49 = vsyncadd [#allocation4], %s48
      %s51 = sshll.u32 [#allocation7], 4
      %s52 = int_to_ptr.vmem [resolvable:$true] %s51
      %54 = dma.vmem_to_hbm [thread:$0]  %s52, 128, %s2, [#allocation4]
    $region21: #{tpu_custom_call.1} parent=1 // pred_fallthru
      _
    // Predicated region
    $region22: #{tpu_custom_call.1} parent=1 // pred_check
      _
    $region23: #{tpu_custom_call.1} parent=1 // pred_check_branch
      %56 = sbr.rel (0) target = $region25
    $region24: #{tpu_custom_call.1} parent=1 // pred_region
      %s58 = ssub.s32 128, 128
      %59 = vsyncadd [#allocation9], %s58
      %s61 = sshll.u32 [#allocation8], 4
      %s62 = int_to_ptr.vmem [resolvable:$true] %s61
      %64 = dma.vmem_to_hbm [thread:$0]  %s62, 128, %s3, [#allocation9]
    $region25: #{tpu_custom_call.1} parent=1 // pred_fallthru
      _
    // Predicated region
    $region26: #{tpu_custom_call.1} parent=1 // pred_check
      _
    $region27: #{tpu_custom_call.1} parent=1 // pred_check_branch
      %66 = sbr.rel (0) target = $region29
    $region28: #{tpu_custom_call.1} parent=1 // pred_region
      %67 = dma.done [#allocation4], 128
    $region29: #{tpu_custom_call.1} parent=1 // pred_fallthru
      _
    // Predicated region
    $region30: #{tpu_custom_call.1} parent=1 // pred_check
      _
    $region31: #{tpu_custom_call.1} parent=1 // pred_check_branch
      %69 = sbr.rel (0) target = $region33
    $region32: #{tpu_custom_call.1} parent=1 // pred_region
      %70 = dma.done [#allocation9], 128
    $region33: #{tpu_custom_call.1} parent=1 // pred_fallthru
      _
    %71 = vsyncpa [#allocation3], 1
    %72 = vsyncpa [#allocation6], 1
    %73 = vsyncpa [#allocation4], 1
    %74 = vsyncpa [#allocation9], 1

</llo_original>
